<compile_context>
chip_gen: v6e
topology: v6e:2x2x1
jax: 0.10.0
libtpu: 0.0.40
codegen_flags: <defaults>
</compile_context>

<pallas_src>
import functools

import jax
import jax.numpy as jnp
from jax import lax
from jax.experimental import pallas as pl
from jax.experimental.pallas import tpu as pltpu

EPS = 1e-5  # nn.BatchNorm2d default eps


def _resblock_kernel(x_ref, w1_ref, g1_ref, be1_ref, w2_ref, g2_ref, be2_ref,
                     out_ref, *, N, H, W, Cin, Ch, Cout, H1, W1, H2, W2, pad,
                     mm_dtype):
    f32 = jnp.float32
    xv = x_ref[...].astype(f32)          # (N, H*W*Cin) — single lane-dense load

    def im2col(get_pixel, Ho, Wo):
        # Conv LHS: one row per (output pixel, batch) pair, row index
        # (i*Wo + j)*N + n; columns ordered (tap_di, tap_dj, channel), matching
        # the HWIO weight reshaped to (9*C, Cout). Built only from static
        # lane/sublane slices + concats (no strided or masked loads).
        rows = []
        for i in range(Ho):
            for j in range(Wo):
                taps = [get_pixel(2 * i + di, 2 * j + dj)
                        for di in range(3) for dj in range(3)]
                rows.append(jnp.concatenate(taps, axis=-1))   # (N, 9*C)
        return jnp.concatenate(rows, axis=0)                  # (Ho*Wo*N, 9*C)

    def bn_relu(y, g_ref, be_ref):
        # Train-mode BatchNorm2d: batch mean / biased variance over every
        # (n, h, w) sample == every row of y, folded into one per-channel
        # scale/shift; rsqrt goes to the EUP. Then ReLU.
        m = jnp.mean(y, axis=0, keepdims=True)
        v = jnp.mean((y - m) ** 2, axis=0, keepdims=True)
        scale = g_ref[...].astype(f32) * lax.rsqrt(v + EPS)
        shift = be_ref[...].astype(f32) - m * scale
        return jnp.maximum(y * scale + shift, 0.0)

    # ---- conv1 (3x3, stride 2, zero pad) as ONE matmul -> BN1 -> ReLU ----
    # NOTE: the conv bias is dropped on purpose — a per-channel constant is
    # exactly cancelled by the train-mode BN mean subtraction that follows.
    def x_pixel(hi, wi):                 # padded coords; zeros outside image
        hr, wr = hi - pad, wi - pad
        if 0 <= hr < H and 0 <= wr < W:
            s = (hr * W + wr) * Cin
            return xv[:, s:s + Cin]      # (N, Cin) static lane slice
        return jnp.zeros((N, Cin), f32)

    lhs1 = im2col(x_pixel, H1, W1)                            # (H1*W1*N, 9*Cin)
    y1 = jnp.dot(lhs1.astype(mm_dtype), w1_ref[...].astype(mm_dtype),
                 preferred_element_type=f32)
    h1 = bn_relu(y1, g1_ref, be1_ref)                         # (H1*W1*N, Ch)

    # ---- conv2 -> BN2 -> ReLU, gathering from h1 kept in registers ----
    def h1_pixel(hi, wi):
        hr, wr = hi - pad, wi - pad
        if 0 <= hr < H1 and 0 <= wr < W1:
            s = (hr * W1 + wr) * N
            return h1[s:s + N, :]        # (N, Ch) static sublane slice
        return jnp.zeros((N, Ch), f32)

    lhs2 = im2col(h1_pixel, H2, W2)                           # (H2*W2*N, 9*Ch)
    y2 = jnp.dot(lhs2.astype(mm_dtype), w2_ref[...].astype(mm_dtype),
                 preferred_element_type=f32)
    cb = bn_relu(y2, g2_ref, be2_ref)                         # (N, Cout) since H2=W2=1

    # ---- residual add, lane-dense output (N, H*W*Cin) ----
    # Wrapper guarantees H2 == W2 == 1 and Cout == Cin, so torch's broadcast
    # `x + convblock(x)` is "add cb[n, :] at every spatial position".  The
    # lane-concat reproduces exactly the (h, w, c)-fastest flat ordering.
    res = jnp.concatenate([cb] * (H * W), axis=-1)            # (N, H*W*Cout)
    out_ref[...] = (xv + res).astype(out_ref.dtype)


def resblock_forward(x_nchw, params, pad, *, mm_dtype=jnp.float32):
    """Fused ResBlock forward.  x_nchw: (N, Cin, H, W), PyTorch layout.

    mm_dtype: matmul operand dtype.  float32 keeps exact parity with the f32
    reference; on v6e/v7x pass jnp.bfloat16 to feed the MXU at full rate
    (accumulation stays in f32 either way).
    """
    w1, b1, g1, be1, w2, b2, g2, be2 = params
    del b1, b2   # exactly cancelled by train-mode BN mean subtraction
    N, Cin, H, W = x_nchw.shape
    Ch, Cout = w1.shape[-1], w2.shape[-1]
    H1 = (H + 2 * pad - 3) // 2 + 1
    W1 = (W + 2 * pad - 3) // 2 + 1
    H2 = (H1 + 2 * pad - 3) // 2 + 1
    W2 = (W1 + 2 * pad - 3) // 2 + 1
    if not (H2 == 1 and W2 == 1 and Cout == Cin):
        # TODO(synk): other numpy-broadcast shape combos torch would accept for
        # `x + self.convblock(x)` are not implemented in the fused kernel.
        raise NotImplementedError(
            "fused kernel supports the (N,H,W,C) + (N,1,1,C) residual broadcast")

    x_nhwc = jnp.transpose(x_nchw, (0, 2, 3, 1))
    x_flat = x_nhwc.reshape(N, H * W * Cin)    # lane-dense residual/output layout
    w1_2d = w1.reshape(9 * Cin, Ch)            # HWIO -> (9*Cin, Ch), matches im2col tap order
    w2_2d = w2.reshape(9 * Ch, Cout)

    kernel = functools.partial(
        _resblock_kernel, N=N, H=H, W=W, Cin=Cin, Ch=Ch, Cout=Cout,
        H1=H1, W1=W1, H2=H2, W2=W2, pad=pad, mm_dtype=mm_dtype)

    vmem = pl.BlockSpec(memory_space=pltpu.MemorySpace.VMEM)
    out_flat = pl.pallas_call(
        kernel,
        out_shape=jax.ShapeDtypeStruct((N, H * W * Cin), x_nchw.dtype),
        in_specs=[vmem] * 7,
        out_specs=vmem,
    )(x_flat, w1_2d, g1.reshape(1, -1), be1.reshape(1, -1),
      w2_2d, g2.reshape(1, -1), be2.reshape(1, -1))

    return jnp.transpose(out_flat.reshape(N, H, W, Cin), (0, 3, 1, 2))


# ---------------- pure-JAX reference (faithful to the torch module) ----------------
def _conv_ref(x, w, b, pad):
    y = lax.conv_general_dilated(x, w, window_strides=(2, 2),
                                 padding=[(pad, pad), (pad, pad)],
                                 dimension_numbers=('NHWC', 'HWIO', 'NHWC'))
    return y + b.reshape(1, 1, 1, -1)


def _bn_relu_ref(y, g, be):
    m = jnp.mean(y, axis=(0, 1, 2), keepdims=True)
    v = jnp.mean((y - m) ** 2, axis=(0, 1, 2), keepdims=True)
    return jnp.maximum(g.reshape(1, 1, 1, -1) * (y - m) / jnp.sqrt(v + EPS)
                       + be.reshape(1, 1, 1, -1), 0.0)


def resblock_ref(x_nchw, params, pad):
    w1, b1, g1, be1, w2, b2, g2, be2 = params
    x = jnp.transpose(x_nchw, (0, 2, 3, 1))
    h = _bn_relu_ref(_conv_ref(x, w1, b1, pad), g1, be1)
    h = _bn_relu_ref(_conv_ref(h, w2, b2, pad), g2, be2)
    return jnp.transpose(x + h, (0, 3, 1, 2))


if __name__ == "__main__":
    # Shapes chosen so torch's `x + self.convblock(x)` is valid via broadcast:
    # spatial 4x4 -> conv1 -> 2x2 -> conv2 -> 1x1, and out_size == in_size.
    N, Cin, H, W = 2, 8, 4, 4
    hidden, Cout, pad = 16, 8, 1

    key = jax.random.PRNGKey(0)
    ks = jax.random.split(key, 9)
    x_nchw = jax.random.normal(ks[0], (N, Cin, H, W), jnp.float32)

    # deterministic synthetic parameters (conv weights in HWIO layout)
    w1 = 0.1 * jax.random.normal(ks[1], (3, 3, Cin, hidden), jnp.float32)
    b1 = 0.1 * jax.random.normal(ks[2], (hidden,), jnp.float32)
    g1 = 1.0 + 0.1 * jax.random.normal(ks[3], (hidden,), jnp.float32)
    be1 = 0.1 * jax.random.normal(ks[4], (hidden,), jnp.float32)
    w2 = 0.1 * jax.random.normal(ks[5], (3, 3, hidden, Cout), jnp.float32)
    b2 = 0.1 * jax.random.normal(ks[6], (Cout,), jnp.float32)
    g2 = 1.0 + 0.1 * jax.random.normal(ks[7], (Cout,), jnp.float32)
    be2 = 0.1 * jax.random.normal(ks[8], (Cout,), jnp.float32)
    params = (w1, b1, g1, be1, w2, b2, g2, be2)

    out = resblock_forward(x_nchw, params, pad)
    out = jax.block_until_ready(out)

    ref = resblock_ref(x_nchw, params, pad)
    assert out.shape == x_nchw.shape
    err = jnp.max(jnp.abs(out - ref))
    assert jnp.allclose(out, ref, atol=1e-4, rtol=1e-4), f"max abs err {err}"

    print("KERNEL_OK")
</pallas_src>

<mosaic_0001>
module attributes {stable_mosaic.version = 11 : i64} {
  func.func @_resblock_kernel(%arg0: memref<2x128xf32, #tpu.memory_space<vmem>>, %arg1: memref<72x16xf32, #tpu.memory_space<vmem>>, %arg2: memref<1x16xf32, #tpu.memory_space<vmem>>, %arg3: memref<1x16xf32, #tpu.memory_space<vmem>>, %arg4: memref<144x8xf32, #tpu.memory_space<vmem>>, %arg5: memref<1x8xf32, #tpu.memory_space<vmem>>, %arg6: memref<1x8xf32, #tpu.memory_space<vmem>>, %arg7: memref<2x128xf32, #tpu.memory_space<vmem>>) attributes {dimension_semantics = [], scalar_prefetch = 0 : i64, scratch_operands = 0 : i64, tpu.core_type = #tpu.core_type<tc>} {
    %c0 = arith.constant 0 : index
    %c0_0 = arith.constant 0 : index
    %0 = vector.load %arg0[%c0, %c0_0] : memref<2x128xf32, #tpu.memory_space<vmem>>, vector<2x128xf32>
    %cst = arith.constant 0.000000e+00 : f32
    %1 = vector.broadcast %cst : f32 to vector<2x8xf32>
    %cst_1 = arith.constant 0.000000e+00 : f32
    %2 = vector.broadcast %cst_1 : f32 to vector<2x8xf32>
    %cst_2 = arith.constant 0.000000e+00 : f32
    %3 = vector.broadcast %cst_2 : f32 to vector<2x8xf32>
    %cst_3 = arith.constant 0.000000e+00 : f32
    %4 = vector.broadcast %cst_3 : f32 to vector<2x8xf32>
    %5 = vector.extract_strided_slice %0 {offsets = [0, 0], sizes = [2, 8], strides = [1, 1]} : vector<2x128xf32> to vector<2x8xf32>
    %6 = vector.extract_strided_slice %0 {offsets = [0, 8], sizes = [2, 8], strides = [1, 1]} : vector<2x128xf32> to vector<2x8xf32>
    %cst_4 = arith.constant 0.000000e+00 : f32
    %7 = vector.broadcast %cst_4 : f32 to vector<2x8xf32>
    %8 = vector.extract_strided_slice %0 {offsets = [0, 32], sizes = [2, 8], strides = [1, 1]} : vector<2x128xf32> to vector<2x8xf32>
    %9 = vector.extract_strided_slice %0 {offsets = [0, 40], sizes = [2, 8], strides = [1, 1]} : vector<2x128xf32> to vector<2x8xf32>
    %10 = tpu.concatenate %1, %2, %3, %4, %5, %6, %7, %8, %9 in 1 : vector<2x8xf32>, vector<2x8xf32>, vector<2x8xf32>, vector<2x8xf32>, vector<2x8xf32>, vector<2x8xf32>, vector<2x8xf32>, vector<2x8xf32>, vector<2x8xf32> -> vector<2x72xf32>
    %cst_5 = arith.constant 0.000000e+00 : f32
    %11 = vector.broadcast %cst_5 : f32 to vector<2x8xf32>
    %cst_6 = arith.constant 0.000000e+00 : f32
    %12 = vector.broadcast %cst_6 : f32 to vector<2x8xf32>
    %cst_7 = arith.constant 0.000000e+00 : f32
    %13 = vector.broadcast %cst_7 : f32 to vector<2x8xf32>
    %14 = vector.extract_strided_slice %0 {offsets = [0, 8], sizes = [2, 8], strides = [1, 1]} : vector<2x128xf32> to vector<2x8xf32>
    %15 = vector.extract_strided_slice %0 {offsets = [0, 16], sizes = [2, 8], strides = [1, 1]} : vector<2x128xf32> to vector<2x8xf32>
    %16 = vector.extract_strided_slice %0 {offsets = [0, 24], sizes = [2, 8], strides = [1, 1]} : vector<2x128xf32> to vector<2x8xf32>
    %17 = vector.extract_strided_slice %0 {offsets = [0, 40], sizes = [2, 8], strides = [1, 1]} : vector<2x128xf32> to vector<2x8xf32>
    %18 = vector.extract_strided_slice %0 {offsets = [0, 48], sizes = [2, 8], strides = [1, 1]} : vector<2x128xf32> to vector<2x8xf32>
    %19 = vector.extract_strided_slice %0 {offsets = [0, 56], sizes = [2, 8], strides = [1, 1]} : vector<2x128xf32> to vector<2x8xf32>
    %20 = tpu.concatenate %11, %12, %13, %14, %15, %16, %17, %18, %19 in 1 : vector<2x8xf32>, vector<2x8xf32>, vector<2x8xf32>, vector<2x8xf32>, vector<2x8xf32>, vector<2x8xf32>, vector<2x8xf32>, vector<2x8xf32>, vector<2x8xf32> -> vector<2x72xf32>
    %cst_8 = arith.constant 0.000000e+00 : f32
    %21 = vector.broadcast %cst_8 : f32 to vector<2x8xf32>
    %22 = vector.extract_strided_slice %0 {offsets = [0, 32], sizes = [2, 8], strides = [1, 1]} : vector<2x128xf32> to vector<2x8xf32>
    %23 = vector.extract_strided_slice %0 {offsets = [0, 40], sizes = [2, 8], strides = [1, 1]} : vector<2x128xf32> to vector<2x8xf32>
    %cst_9 = arith.constant 0.000000e+00 : f32
    %24 = vector.broadcast %cst_9 : f32 to vector<2x8xf32>
    %25 = vector.extract_strided_slice %0 {offsets = [0, 64], sizes = [2, 8], strides = [1, 1]} : vector<2x128xf32> to vector<2x8xf32>
    %26 = vector.extract_strided_slice %0 {offsets = [0, 72], sizes = [2, 8], strides = [1, 1]} : vector<2x128xf32> to vector<2x8xf32>
    %cst_10 = arith.constant 0.000000e+00 : f32
    %27 = vector.broadcast %cst_10 : f32 to vector<2x8xf32>
    %28 = vector.extract_strided_slice %0 {offsets = [0, 96], sizes = [2, 8], strides = [1, 1]} : vector<2x128xf32> to vector<2x8xf32>
    %29 = vector.extract_strided_slice %0 {offsets = [0, 104], sizes = [2, 8], strides = [1, 1]} : vector<2x128xf32> to vector<2x8xf32>
    %30 = tpu.concatenate %21, %22, %23, %24, %25, %26, %27, %28, %29 in 1 : vector<2x8xf32>, vector<2x8xf32>, vector<2x8xf32>, vector<2x8xf32>, vector<2x8xf32>, vector<2x8xf32>, vector<2x8xf32>, vector<2x8xf32>, vector<2x8xf32> -> vector<2x72xf32>
    %31 = vector.extract_strided_slice %0 {offsets = [0, 40], sizes = [2, 8], strides = [1, 1]} : vector<2x128xf32> to vector<2x8xf32>
    %32 = vector.extract_strided_slice %0 {offsets = [0, 48], sizes = [2, 8], strides = [1, 1]} : vector<2x128xf32> to vector<2x8xf32>
    %33 = vector.extract_strided_slice %0 {offsets = [0, 56], sizes = [2, 8], strides = [1, 1]} : vector<2x128xf32> to vector<2x8xf32>
    %34 = vector.extract_strided_slice %0 {offsets = [0, 72], sizes = [2, 8], strides = [1, 1]} : vector<2x128xf32> to vector<2x8xf32>
    %35 = vector.extract_strided_slice %0 {offsets = [0, 80], sizes = [2, 8], strides = [1, 1]} : vector<2x128xf32> to vector<2x8xf32>
    %36 = vector.extract_strided_slice %0 {offsets = [0, 88], sizes = [2, 8], strides = [1, 1]} : vector<2x128xf32> to vector<2x8xf32>
    %37 = vector.extract_strided_slice %0 {offsets = [0, 104], sizes = [2, 8], strides = [1, 1]} : vector<2x128xf32> to vector<2x8xf32>
    %38 = vector.extract_strided_slice %0 {offsets = [0, 112], sizes = [2, 8], strides = [1, 1]} : vector<2x128xf32> to vector<2x8xf32>
    %39 = vector.extract_strided_slice %0 {offsets = [0, 120], sizes = [2, 8], strides = [1, 1]} : vector<2x128xf32> to vector<2x8xf32>
    %40 = tpu.concatenate %31, %32, %33, %34, %35, %36, %37, %38, %39 in 1 : vector<2x8xf32>, vector<2x8xf32>, vector<2x8xf32>, vector<2x8xf32>, vector<2x8xf32>, vector<2x8xf32>, vector<2x8xf32>, vector<2x8xf32>, vector<2x8xf32> -> vector<2x72xf32>
    %41 = tpu.concatenate %10, %20, %30, %40 in 0 : vector<2x72xf32>, vector<2x72xf32>, vector<2x72xf32>, vector<2x72xf32> -> vector<8x72xf32>
    %c0_11 = arith.constant 0 : index
    %c0_12 = arith.constant 0 : index
    %42 = vector.load %arg1[%c0_11, %c0_12] : memref<72x16xf32, #tpu.memory_space<vmem>>, vector<72x16xf32>
    %cst_13 = arith.constant dense<0.000000e+00> : vector<8x16xf32>
    %43 = tpu.matmul %41, %42, %cst_13 {dimension_numbers = #tpu.dot_dimension_numbers<[1], [0], [0], [1], [0, 0, 1, 1], [], []>} : vector<8x72xf32>, vector<72x16xf32>, vector<8x16xf32> -> vector<8x16xf32>
    %cst_14 = arith.constant dense<0.000000e+00> : vector<16xf32>
    %44 = vector.multi_reduction <add>, %43, %cst_14 [0] : vector<8x16xf32> to vector<16xf32>
    %45 = vector.shape_cast %44 : vector<16xf32> to vector<1x16xf32>
    %cst_15 = arith.constant 8.000000e+00 : f32
    %46 = vector.broadcast %cst_15 : f32 to vector<1x16xf32>
    %47 = arith.divf %45, %46 : vector<1x16xf32>
    %48 = vector.broadcast %47 : vector<1x16xf32> to vector<8x16xf32>
    %49 = arith.subf %43, %48 : vector<8x16xf32>
    %50 = arith.mulf %49, %49 : vector<8x16xf32>
    %cst_16 = arith.constant dense<0.000000e+00> : vector<16xf32>
    %51 = vector.multi_reduction <add>, %50, %cst_16 [0] : vector<8x16xf32> to vector<16xf32>
    %52 = vector.shape_cast %51 : vector<16xf32> to vector<1x16xf32>
    %cst_17 = arith.constant 8.000000e+00 : f32
    %53 = vector.broadcast %cst_17 : f32 to vector<1x16xf32>
    %54 = arith.divf %52, %53 : vector<1x16xf32>
    %c0_18 = arith.constant 0 : index
    %c0_19 = arith.constant 0 : index
    %55 = vector.load %arg2[%c0_18, %c0_19] : memref<1x16xf32, #tpu.memory_space<vmem>>, vector<1x16xf32>
    %cst_20 = arith.constant 9.99999974E-6 : f32
    %56 = vector.broadcast %cst_20 : f32 to vector<1x16xf32>
    %57 = arith.addf %54, %56 : vector<1x16xf32>
    %58 = math.rsqrt %57 : vector<1x16xf32>
    %59 = arith.mulf %55, %58 : vector<1x16xf32>
    %c0_21 = arith.constant 0 : index
    %c0_22 = arith.constant 0 : index
    %60 = vector.load %arg3[%c0_21, %c0_22] : memref<1x16xf32, #tpu.memory_space<vmem>>, vector<1x16xf32>
    %61 = arith.mulf %47, %59 : vector<1x16xf32>
    %62 = arith.subf %60, %61 : vector<1x16xf32>
    %63 = vector.broadcast %59 : vector<1x16xf32> to vector<8x16xf32>
    %64 = arith.mulf %43, %63 : vector<8x16xf32>
    %65 = vector.broadcast %62 : vector<1x16xf32> to vector<8x16xf32>
    %66 = arith.addf %64, %65 : vector<8x16xf32>
    %cst_23 = arith.constant 0.000000e+00 : f32
    %67 = vector.broadcast %cst_23 : f32 to vector<8x16xf32>
    %68 = arith.maximumf %66, %67 : vector<8x16xf32>
    %cst_24 = arith.constant 0.000000e+00 : f32
    %69 = vector.broadcast %cst_24 : f32 to vector<2x16xf32>
    %cst_25 = arith.constant 0.000000e+00 : f32
    %70 = vector.broadcast %cst_25 : f32 to vector<2x16xf32>
    %cst_26 = arith.constant 0.000000e+00 : f32
    %71 = vector.broadcast %cst_26 : f32 to vector<2x16xf32>
    %cst_27 = arith.constant 0.000000e+00 : f32
    %72 = vector.broadcast %cst_27 : f32 to vector<2x16xf32>
    %73 = vector.extract_strided_slice %68 {offsets = [0, 0], sizes = [2, 16], strides = [1, 1]} : vector<8x16xf32> to vector<2x16xf32>
    %74 = vector.extract_strided_slice %68 {offsets = [2, 0], sizes = [2, 16], strides = [1, 1]} : vector<8x16xf32> to vector<2x16xf32>
    %cst_28 = arith.constant 0.000000e+00 : f32
    %75 = vector.broadcast %cst_28 : f32 to vector<2x16xf32>
    %76 = vector.extract_strided_slice %68 {offsets = [4, 0], sizes = [2, 16], strides = [1, 1]} : vector<8x16xf32> to vector<2x16xf32>
    %77 = vector.extract_strided_slice %68 {offsets = [6, 0], sizes = [2, 16], strides = [1, 1]} : vector<8x16xf32> to vector<2x16xf32>
    %78 = tpu.concatenate %69, %70, %71, %72, %73, %74, %75, %76, %77 in 1 : vector<2x16xf32>, vector<2x16xf32>, vector<2x16xf32>, vector<2x16xf32>, vector<2x16xf32>, vector<2x16xf32>, vector<2x16xf32>, vector<2x16xf32>, vector<2x16xf32> -> vector<2x144xf32>
    %c0_29 = arith.constant 0 : index
    %c0_30 = arith.constant 0 : index
    %79 = vector.load %arg4[%c0_29, %c0_30] : memref<144x8xf32, #tpu.memory_space<vmem>>, vector<144x8xf32>
    %cst_31 = arith.constant dense<0.000000e+00> : vector<2x8xf32>
    %80 = tpu.matmul %78, %79, %cst_31 {dimension_numbers = #tpu.dot_dimension_numbers<[1], [0], [0], [1], [0, 0, 1, 1], [], []>} : vector<2x144xf32>, vector<144x8xf32>, vector<2x8xf32> -> vector<2x8xf32>
    %cst_32 = arith.constant dense<0.000000e+00> : vector<8xf32>
    %81 = vector.multi_reduction <add>, %80, %cst_32 [0] : vector<2x8xf32> to vector<8xf32>
    %82 = vector.shape_cast %81 : vector<8xf32> to vector<1x8xf32>
    %cst_33 = arith.constant 2.000000e+00 : f32
    %83 = vector.broadcast %cst_33 : f32 to vector<1x8xf32>
    %84 = arith.divf %82, %83 : vector<1x8xf32>
    %85 = vector.broadcast %84 : vector<1x8xf32> to vector<2x8xf32>
    %86 = arith.subf %80, %85 : vector<2x8xf32>
    %87 = arith.mulf %86, %86 : vector<2x8xf32>
    %cst_34 = arith.constant dense<0.000000e+00> : vector<8xf32>
    %88 = vector.multi_reduction <add>, %87, %cst_34 [0] : vector<2x8xf32> to vector<8xf32>
    %89 = vector.shape_cast %88 : vector<8xf32> to vector<1x8xf32>
    %cst_35 = arith.constant 2.000000e+00 : f32
    %90 = vector.broadcast %cst_35 : f32 to vector<1x8xf32>
    %91 = arith.divf %89, %90 : vector<1x8xf32>
    %c0_36 = arith.constant 0 : index
    %c0_37 = arith.constant 0 : index
    %92 = vector.load %arg5[%c0_36, %c0_37] : memref<1x8xf32, #tpu.memory_space<vmem>>, vector<1x8xf32>
    %cst_38 = arith.constant 9.99999974E-6 : f32
    %93 = vector.broadcast %cst_38 : f32 to vector<1x8xf32>
    %94 = arith.addf %91, %93 : vector<1x8xf32>
    %95 = math.rsqrt %94 : vector<1x8xf32>
    %96 = arith.mulf %92, %95 : vector<1x8xf32>
    %c0_39 = arith.constant 0 : index
    %c0_40 = arith.constant 0 : index
    %97 = vector.load %arg6[%c0_39, %c0_40] : memref<1x8xf32, #tpu.memory_space<vmem>>, vector<1x8xf32>
    %98 = arith.mulf %84, %96 : vector<1x8xf32>
    %99 = arith.subf %97, %98 : vector<1x8xf32>
    %100 = vector.broadcast %96 : vector<1x8xf32> to vector<2x8xf32>
    %101 = arith.mulf %80, %100 : vector<2x8xf32>
    %102 = vector.broadcast %99 : vector<1x8xf32> to vector<2x8xf32>
    %103 = arith.addf %101, %102 : vector<2x8xf32>
    %cst_41 = arith.constant 0.000000e+00 : f32
    %104 = vector.broadcast %cst_41 : f32 to vector<2x8xf32>
    %105 = arith.maximumf %103, %104 : vector<2x8xf32>
    %106 = tpu.concatenate %105, %105, %105, %105, %105, %105, %105, %105, %105, %105, %105, %105, %105, %105, %105, %105 in 1 : vector<2x8xf32>, vector<2x8xf32>, vector<2x8xf32>, vector<2x8xf32>, vector<2x8xf32>, vector<2x8xf32>, vector<2x8xf32>, vector<2x8xf32>, vector<2x8xf32>, vector<2x8xf32>, vector<2x8xf32>, vector<2x8xf32>, vector<2x8xf32>, vector<2x8xf32>, vector<2x8xf32>, vector<2x8xf32> -> vector<2x128xf32>
    %107 = arith.addf %0, %106 : vector<2x128xf32>
    %c0_42 = arith.constant 0 : index
    %c0_43 = arith.constant 0 : index
    %108 = vector.load %arg7[%c0_42, %c0_43] : memref<2x128xf32, #tpu.memory_space<vmem>>, vector<2x128xf32>
    tpu.vector_store %arg7[%c0_42, %c0_43], %107 {strides = array<i32>} : memref<2x128xf32, #tpu.memory_space<vmem>>, vector<2x128xf32>,
    return
  }
}

</mosaic_0001>

<llo_original>
// kernel: tpu_custom_call.1
$region0: #{tpu_custom_call.1}
  #allocation0 [shape = 'u32[]', space=smem, size = 0x4, offset = 0x4, fixed_abs, tag = 'smem constant byte address 0x4 - core index']
  #allocation1 [shape = 'u32[144,128]{1,0:T(1,128)}', space=vmem, size = 0x12000, scoped, tag = 'internal scratch']
  %s0 = inlined_call_operand.vmem [shape: f32[2,128], index: 0, kind: input, shape index: {}]
  %s1 = inlined_call_operand.vmem [shape: f32[72,16], index: 1, kind: input, shape index: {}]
  %s2 = inlined_call_operand.vmem [shape: f32[1,16], index: 2, kind: input, shape index: {}]
  %s3 = inlined_call_operand.vmem [shape: f32[1,16], index: 3, kind: input, shape index: {}]
  %s4 = inlined_call_operand.vmem [shape: f32[144,8], index: 4, kind: input, shape index: {}]
  %s5 = inlined_call_operand.vmem [shape: f32[1,8], index: 5, kind: input, shape index: {}]
  %s6 = inlined_call_operand.vmem [shape: f32[1,8], index: 6, kind: input, shape index: {}]
  %s7 = inlined_call_operand.hbm [shape: f32[2,128], index: 7, kind: output, shape index: {}]
  %s8 = sld [smem:[#allocation0]]
  $region38: #{tpu_custom_call.1} parent=0
    _
  %s10 = ssub.s32 1, %s8
  %s11 = scalar_select 0, %s10, %s8
  $region1: #{tpu_custom_call.1} parent=0
    #allocation2 [shape = 'u8[1024]{0}', space=vmem, size = 0x400, scoped, tag = 'output window, operand 0, single buffered']
    #allocation3 [shape = 's32[1]{0}', space=sflag, size = 0x4, scoped, tag = 'scoped memory for tpu_custom_call.1']
    %12 = vsyncpa [#allocation3], 0
    // Predicated region
    $region2: #{tpu_custom_call.1} parent=1 // pred_check
      _
    $region3: #{tpu_custom_call.1} parent=1 // pred_check_branch
      %14 = sbr.rel (0) target = $region5
    $region4: #{tpu_custom_call.1} parent=1 // pred_region
      _
    $region5: #{tpu_custom_call.1} parent=1 // pred_fallthru
      _
    // Predicated region
    $region6: #{tpu_custom_call.1} parent=1 // pred_check
      _
    $region7: #{tpu_custom_call.1} parent=1 // pred_check_branch
      %16 = sbr.rel (0) target = $region9
    $region8: #{tpu_custom_call.1} parent=1 // pred_region
      _
    $region9: #{tpu_custom_call.1} parent=1 // pred_fallthru
      _
    // Predicated region
    $region10: #{tpu_custom_call.1} parent=1 // pred_check
      _
    $region11: #{tpu_custom_call.1} parent=1 // pred_check_branch
      %18 = sbr.rel (0) target = $region13
    $region12: #{tpu_custom_call.1} parent=1 // pred_region
      _
    $region13: #{tpu_custom_call.1} parent=1 // pred_fallthru
      _
    // Predicated region
    $region14: #{tpu_custom_call.1} parent=1 // pred_check
      _
    $region15: #{tpu_custom_call.1} parent=1 // pred_check_branch
      %20 = sbr.rel (0) target = $region17
    $region16: #{tpu_custom_call.1} parent=1 // pred_region
      _
    $region17: #{tpu_custom_call.1} parent=1 // pred_fallthru
      _
    // Predicated region
    $region18: #{tpu_custom_call.1} parent=1 // pred_check
      _
    $region19: #{tpu_custom_call.1} parent=1 // pred_check_branch
      %22 = sbr.rel (0) target = $region21
    $region20: #{tpu_custom_call.1} parent=1 // pred_region
      _
    $region21: #{tpu_custom_call.1} parent=1 // pred_fallthru
      _
    // Predicated region
    $region22: #{tpu_custom_call.1} parent=1 // pred_check
      _
    $region23: #{tpu_custom_call.1} parent=1 // pred_check_branch
      %24 = sbr.rel (0) target = $region25
    $region24: #{tpu_custom_call.1} parent=1 // pred_region
      _
    $region25: #{tpu_custom_call.1} parent=1 // pred_fallthru
      _
    // Predicated region
    $region26: #{tpu_custom_call.1} parent=1 // pred_check
      _
    $region27: #{tpu_custom_call.1} parent=1 // pred_check_branch
      %26 = sbr.rel (0) target = $region29
    $region28: #{tpu_custom_call.1} parent=1 // pred_region
      _
    $region29: #{tpu_custom_call.1} parent=1 // pred_fallthru
      _
    %v27 = vld [vmem:[%s0] sm:$0x3]
    %29 = vrot.lane.b32.xlu0 %v27, 32
    %v30 = vpop.permute.xlu0 %29
    %32 = vrot.lane.b32.xlu0 %v27, 24
    %v33 = vpop.permute.xlu0 %32
    %vm35 = vcmask 261120
    %v36 = vsel %vm35, 0.0, %v30
    %vm37 = vcmask 326656
    %v38 = vsel %vm37, %v36, %v30
    %vm39 = vcmask 392192
    %v40 = vsel %vm39, %v38, 0.0
    %vm41 = vcmask 457728
    %v42 = vsel %vm41, %v40, %v33
    %vm43 = vcmask 523264
    %v44 = vsel %vm43, %v42, %v33
    %45 = vrot.lane.b32.xlu0 %v27, 16
    %v46 = vpop.permute.xlu0 %45
    %48 = vrot.lane.b32.xlu0 %v27, 8
    %v49 = vpop.permute.xlu0 %48
    %vm51 = vcmask 195584
    %v52 = vsel %vm51, 0.0, %v46
    %v53 = vsel %vm35, %v52, %v46
    %v54 = vsel %vm37, %v53, %v46
    %v55 = vsel %vm39, %v54, %v49
    %v56 = vsel %vm41, %v55, %v49
    %v57 = vsel %vm43, %v56, %v49
    %58 = vrot.lane.b32.xlu0 %v27, 104
    %v59 = vpop.permute.xlu0 %58
    %61 = vrot.lane.b32.xlu0 %v27, 96
    %v62 = vpop.permute.xlu0 %61
    %64 = vrot.lane.b32.xlu0 %v27, 88
    %v65 = vpop.permute.xlu0 %64
    %vm67 = vcmask 64512
    %v68 = vsel %vm67, 0.0, %v59
    %vm69 = vcmask 130048
    %v70 = vsel %vm69, %v68, %v59
    %v71 = vsel %vm51, %v70, 0.0
    %v72 = vsel %vm35, %v71, %v62
    %v73 = vsel %vm37, %v72, %v62
    %v74 = vsel %vm39, %v73, 0.0
    %v75 = vsel %vm41, %v74, %v65
    %v76 = vsel %vm43, %v75, %v65
    %77 = vrot.lane.b32.xlu0 %v27, 80
    %v78 = vpop.permute.xlu0 %77
    %80 = vrot.lane.b32.xlu0 %v27, 72
    %v81 = vpop.permute.xlu0 %80
    %v83 = vsel %vm69, %v65, %v65
    %v84 = vsel %vm51, %v83, %v78
    %v85 = vsel %vm35, %v84, %v78
    %v86 = vsel %vm37, %v85, %v78
    %v87 = vsel %vm39, %v86, %v81
    %v88 = vsel %vm41, %v87, %v81
    %v89 = vsel %vm43, %v88, %v81
    %v91 = vrot.slane %v57, 6
    %v94 = vrot.slane %v76, 4
    %v97 = vrot.slane %v89, 2
    %vm99 = vcmask 1041408
    %v100 = vsel %vm99, %v44, %v91
    %vm101 = vcmask 1043456
    %v102 = vsel %vm101, %v100, %v94
    %vm103 = vcmask 1045504
    %v104 = vsel %vm103, %v102, %v97
    %v105 = vld [vmem:[%s1] sm:$0xff]
    %v106 = vld [vmem:[%s1 + $0x8] sm:$0xff]
    %v107 = vld [vmem:[%s1 + $0x10] sm:$0xff]
    %v108 = vld [vmem:[%s1 + $0x18] sm:$0xff]
    %v109 = vld [vmem:[%s1 + $0x20] sm:$0xff]
    %v110 = vld [vmem:[%s1 + $0x28] sm:$0xff]
    %v111 = vld [vmem:[%s1 + $0x30] sm:$0xff]
    %v112 = vld [vmem:[%s1 + $0x38] sm:$0xff]
    %v113 = vld [vmem:[%s1 + $0x40] sm:$0xff]
    %vm114 = vcmask 588800
    %v116 = vsel %vm114, %v104, 0
    %118 = vmatprep.subr.mxu0 0.0
    %119 = vmatpush1.msra.mxu0 0.0
    %120 = vmatprep.subr.mxu0 0.0
    %121 = vmatpush1.msra.mxu0 0.0
    %122 = vmatprep.subr.mxu0 0.0
    %123 = vmatpush1.msra.mxu0 0.0
    %124 = vmatprep.subr.mxu0 0.0
    %125 = vmatpush1.msra.mxu0 0.0
    %126 = vmatprep.subr.mxu0 0.0
    %127 = vmatpush1.msra.mxu0 0.0
    %128 = vmatprep.subr.mxu0 0.0
    %129 = vmatpush1.msra.mxu0 0.0
    %130 = vmatprep.subr.mxu0 0.0
    %131 = vmatpush1.msra.mxu0 0.0
    %132 = vmatprep.subr.mxu0 0.0
    %133 = vmatpush1.msra.mxu0 %v113
    %134 = vmatprep.subr.mxu0 0.0
    %135 = vmatpush1.msra.mxu0 %v112
    %136 = vmatprep.subr.mxu0 0.0
    %137 = vmatpush1.msra.mxu0 %v111
    %138 = vmatprep.subr.mxu0 0.0
    %139 = vmatpush1.msra.mxu0 %v110
    %140 = vmatprep.subr.mxu0 0.0
    %141 = vmatpush1.msra.mxu0 %v109
    %142 = vmatprep.subr.mxu0 0.0
    %143 = vmatpush1.msra.mxu0 %v108
    %144 = vmatprep.subr.mxu0 0.0
    %145 = vmatpush1.msra.mxu0 %v107
    %146 = vmatprep.subr.mxu0 0.0
    %147 = vmatpush1.msra.mxu0 %v106
    %148 = vmatprep.subr.mxu0 0.0
    %149 = vmatpush1.msra.mxu0 %v105
    %150 = vmatprep.subr.mxu0 0.0
    %151 = vmatpush2.msra.mxu0 0.0
    %152 = vmatprep.subr.mxu0 0.0
    %153 = vmatpush2.msra.mxu0 0.0
    %154 = vmatprep.subr.mxu0 0.0
    %155 = vmatpush2.msra.mxu0 0.0
    %156 = vmatprep.subr.mxu0 0.0
    %157 = vmatpush2.msra.mxu0 0.0
    %158 = vmatprep.subr.mxu0 0.0
    %159 = vmatpush2.msra.mxu0 0.0
    %160 = vmatprep.subr.mxu0 0.0
    %161 = vmatpush2.msra.mxu0 0.0
    %162 = vmatprep.subr.mxu0 0.0
    %163 = vmatpush2.msra.mxu0 0.0
    %164 = vmatprep.subr.mxu0 0.0
    %165 = vmatpush2.msra.mxu0 0.0
    %166 = vmatprep.subr.mxu0 0.0
    %167 = vmatpush2.msra.mxu0 0.0
    %168 = vmatprep.subr.mxu0 0.0
    %169 = vmatpush2.msra.mxu0 0.0
    %170 = vmatprep.subr.mxu0 0.0
    %171 = vmatpush2.msra.mxu0 0.0
    %172 = vmatprep.subr.mxu0 0.0
    %173 = vmatpush2.msra.mxu0 0.0
    %174 = vmatprep.subr.mxu0 0.0
    %175 = vmatpush2.msra.mxu0 0.0
    %176 = vmatprep.subr.mxu0 0.0
    %177 = vmatpush2.msra.mxu0 0.0
    %178 = vmatprep.subr.mxu0 0.0
    %179 = vmatpush2.msra.mxu0 0.0
    %180 = vmatprep.subr.mxu0 0.0
    %181 = vmatpush2.msra.mxu0 0.0
    %182 = vmatprep.mubr.f32.mxu0 0.0
    %183 = vmatmul.mubr.f32.gmra.mxu0 %v116
    %v184 = vpop.f32.mrf.mxu0
    %v185 = vadd.f32 0.0, %v184
    %v186 = vpop.f32.mrf.mxu0
    %187 = vdwg.mxu0
    %v188 = vsel %vm69, %v185, 0.0
    %v189 = vrot.slane %v188, 4
    %v190 = vadd.f32 %v188, %v189
    %v191 = vrot.slane %v190, 2
    %v192 = vadd.f32 %v190, %v191
    %v193 = vrot.slane %v192, 1
    %v194 = vadd.f32 %v192, %v193
    %v195 = vrcp.pop 8.0
    %v196 = vmul.f32 %v194, %v195
    %v197 = vsub.f32 %v185, %v196
    %v198 = vmul.f32 %v197, %v197
    %v199 = vsel %vm69, %v198, 0.0
    %v200 = vrot.slane %v199, 4
    %v201 = vadd.f32 %v199, %v200
    %v202 = vrot.slane %v201, 2
    %v203 = vadd.f32 %v201, %v202
    %v204 = vrot.slane %v203, 1
    %v205 = vadd.f32 %v203, %v204
    %v206 = vmul.f32 %v205, %v195
    %v207 = vld [vmem:[%s2] sm:$0x1]
    %v208 = vadd.f32 %v206, 1e-05
    %v209 = vrsqrt.pop %v208
    %v210 = vmul.f32 %v207, %v209
    %v211 = vld [vmem:[%s3] sm:$0x1]
    %v212 = vmul.f32 %v196, %v210
    %v213 = vsub.f32 %v211, %v212
    %v215 = vlaneseq
    %v216 = vshrl.u32 %v215, 7
    %v217 = vsub.s32 0, %v216
    %v218 = vrot.slane %v210, %v217
    %v220 = vmul.f32 %v185, %v218
    %v222 = vlaneseq
    %v223 = vshrl.u32 %v222, 7
    %v224 = vsub.s32 0, %v223
    %v225 = vrot.slane %v213, %v224
    %v227 = vadd.f32 %v220, %v225
    %v228 = vmax.f32 %v227, 0.0
    %230 = vrot.lane.b32.xlu0 %v228, 64
    %v231 = vpop.permute.xlu0 %230
    %v233 = vrot.slane %v228, 2
    %234 = vrot.lane.b32.xlu0 %v233, 80
    %v235 = vpop.permute.xlu0 %234
    %v237 = vrot.slane %v228, 4
    %238 = vrot.lane.b32.xlu0 %v237, 112
    %v239 = vpop.permute.xlu0 %238
    %v241 = vrot.slane %v228, 6
    %v242 = vsel %vm43, 0.0, %v231
    %vm243 = vcmask 654336
    %v244 = vsel %vm243, %v242, %v235
    %vm245 = vcmask 785408
    %v246 = vsel %vm245, %v244, 0.0
    %vm247 = vcmask 916480
    %v248 = vsel %vm247, %v246, %v239
    %v249 = vld [vmem:[%s4] sm:$0xff]
    %v250 = vld [vmem:[%s4 + $0x8] sm:$0xff]
    %v251 = vld [vmem:[%s4 + $0x10] sm:$0xff]
    %v252 = vld [vmem:[%s4 + $0x18] sm:$0xff]
    %v253 = vld [vmem:[%s4 + $0x20] sm:$0xff]
    %v254 = vld [vmem:[%s4 + $0x28] sm:$0xff]
    %v255 = vld [vmem:[%s4 + $0x30] sm:$0xff]
    %v256 = vld [vmem:[%s4 + $0x38] sm:$0xff]
    %v257 = vld [vmem:[%s4 + $0x40] sm:$0xff]
    %v258 = vld [vmem:[%s4 + $0x48] sm:$0xff]
    %v259 = vld [vmem:[%s4 + $0x50] sm:$0xff]
    %v260 = vld [vmem:[%s4 + $0x58] sm:$0xff]
    %v261 = vld [vmem:[%s4 + $0x60] sm:$0xff]
    %v262 = vld [vmem:[%s4 + $0x68] sm:$0xff]
    %v263 = vld [vmem:[%s4 + $0x70] sm:$0xff]
    %v264 = vld [vmem:[%s4 + $0x78] sm:$0xff]
    %v265 = vld [vmem:[%s4 + $0x80] sm:$0xff]
    %v266 = vld [vmem:[%s4 + $0x88] sm:$0xff]
    %v267 = vsel %vm69, %v241, 0
    %269 = vmatprep.subr.mxu0 0.0
    %270 = vmatpush1.msra.mxu0 %v264
    %271 = vmatprep.subr.mxu0 0.0
    %272 = vmatpush1.msra.mxu0 %v263
    %273 = vmatprep.subr.mxu0 0.0
    %274 = vmatpush1.msra.mxu0 %v262
    %275 = vmatprep.subr.mxu0 0.0
    %276 = vmatpush1.msra.mxu0 %v261
    %277 = vmatprep.subr.mxu0 0.0
    %278 = vmatpush1.msra.mxu0 %v260
    %279 = vmatprep.subr.mxu0 0.0
    %280 = vmatpush1.msra.mxu0 %v259
    %281 = vmatprep.subr.mxu0 0.0
    %282 = vmatpush1.msra.mxu0 %v258
    %283 = vmatprep.subr.mxu0 0.0
    %284 = vmatpush1.msra.mxu0 %v257
    %285 = vmatprep.subr.mxu0 0.0
    %286 = vmatpush1.msra.mxu0 %v256
    %287 = vmatprep.subr.mxu0 0.0
    %288 = vmatpush1.msra.mxu0 %v255
    %289 = vmatprep.subr.mxu0 0.0
    %290 = vmatpush1.msra.mxu0 %v254
    %291 = vmatprep.subr.mxu0 0.0
    %292 = vmatpush1.msra.mxu0 %v253
    %293 = vmatprep.subr.mxu0 0.0
    %294 = vmatpush1.msra.mxu0 %v252
    %295 = vmatprep.subr.mxu0 0.0
    %296 = vmatpush1.msra.mxu0 %v251
    %297 = vmatprep.subr.mxu0 0.0
    %298 = vmatpush1.msra.mxu0 %v250
    %299 = vmatprep.subr.mxu0 0.0
    %300 = vmatpush1.msra.mxu0 %v249
    %301 = vmatprep.subr.mxu0 0.0
    %302 = vmatpush2.msra.mxu0 0.0
    %303 = vmatprep.subr.mxu0 0.0
    %304 = vmatpush2.msra.mxu0 0.0
    %305 = vmatprep.subr.mxu0 0.0
    %306 = vmatpush2.msra.mxu0 0.0
    %307 = vmatprep.subr.mxu0 0.0
    %308 = vmatpush2.msra.mxu0 0.0
    %309 = vmatprep.subr.mxu0 0.0
    %310 = vmatpush2.msra.mxu0 0.0
    %311 = vmatprep.subr.mxu0 0.0
    %312 = vmatpush2.msra.mxu0 0.0
    %313 = vmatprep.subr.mxu0 0.0
    %314 = vmatpush2.msra.mxu0 0.0
    %315 = vmatprep.subr.mxu0 0.0
    %316 = vmatpush2.msra.mxu0 0.0
    %317 = vmatprep.subr.mxu0 0.0
    %318 = vmatpush2.msra.mxu0 0.0
    %319 = vmatprep.subr.mxu0 0.0
    %320 = vmatpush2.msra.mxu0 0.0
    %321 = vmatprep.subr.mxu0 0.0
    %322 = vmatpush2.msra.mxu0 0.0
    %323 = vmatprep.subr.mxu0 0.0
    %324 = vmatpush2.msra.mxu0 0.0
    %325 = vmatprep.subr.mxu0 0.0
    %326 = vmatpush2.msra.mxu0 0.0
    %327 = vmatprep.subr.mxu0 0.0
    %328 = vmatpush2.msra.mxu0 0.0
    %329 = vmatprep.subr.mxu0 0.0
    %330 = vmatpush2.msra.mxu0 %v266
    %331 = vmatprep.subr.mxu0 0.0
    %332 = vmatpush2.msra.mxu0 %v265
    %333 = vmatprep.mubr.f32.mxu0 %v267
    %334 = vmatmul.mubr.f32.gmra.mxu0 %v248
    %v335 = vpop.f32.mrf.mxu0
    %v336 = vadd.f32 0.0, %v335
    %v337 = vpop.f32.mrf.mxu0
    %338 = vdwg.mxu0
    %vm339 = vcmask 58368
    %v340 = vsel %vm339, %v336, 0.0
    %v341 = vrot.slane %v340, 4
    %v342 = vadd.f32 %v340, %v341
    %v343 = vrot.slane %v342, 2
    %v344 = vadd.f32 %v342, %v343
    %v345 = vrot.slane %v344, 1
    %v346 = vadd.f32 %v344, %v345
    %v347 = vrcp.pop 2.0
    %v348 = vmul.f32 %v346, %v347
    %v349 = vsub.f32 %v336, %v348
    %v350 = vmul.f32 %v349, %v349
    %v351 = vsel %vm339, %v350, 0.0
    %v352 = vrot.slane %v351, 4
    %v353 = vadd.f32 %v351, %v352
    %v354 = vrot.slane %v353, 2
    %v355 = vadd.f32 %v353, %v354
    %v356 = vrot.slane %v355, 1
    %v357 = vadd.f32 %v355, %v356
    %v358 = vmul.f32 %v357, %v347
    %v359 = vld [vmem:[%s5] sm:$0x1]
    %v360 = vadd.f32 %v358, 1e-05
    %v361 = vrsqrt.pop %v360
    %v362 = vmul.f32 %v359, %v361
    %v363 = vld [vmem:[%s6] sm:$0x1]
    %v364 = vmul.f32 %v348, %v362
    %v365 = vsub.f32 %v363, %v364
    %v367 = vlaneseq
    %v368 = vshrl.u32 %v367, 7
    %v369 = vsub.s32 0, %v368
    %v370 = vrot.slane %v362, %v369
    %v372 = vmul.f32 %v336, %v370
    %v374 = vlaneseq
    %v375 = vshrl.u32 %v374, 7
    %v376 = vsub.s32 0, %v375
    %v377 = vrot.slane %v365, %v376
    %v379 = vadd.f32 %v372, %v377
    %v380 = vmax.f32 %v379, 0.0
    %382 = vrot.lane.b32.xlu0 %v380, 8
    %v383 = vpop.permute.xlu0 %382
    %385 = vrot.lane.b32.xlu0 %v380, 16
    %v386 = vpop.permute.xlu0 %385
    %388 = vrot.lane.b32.xlu0 %v380, 24
    %v389 = vpop.permute.xlu0 %388
    %391 = vrot.lane.b32.xlu0 %v380, 32
    %v392 = vpop.permute.xlu0 %391
    %394 = vrot.lane.b32.xlu0 %v380, 40
    %v395 = vpop.permute.xlu0 %394
    %397 = vrot.lane.b32.xlu0 %v380, 48
    %v398 = vpop.permute.xlu0 %397
    %400 = vrot.lane.b32.xlu0 %v380, 56
    %v401 = vpop.permute.xlu0 %400
    %403 = vrot.lane.b32.xlu0 %v380, 64
    %v404 = vpop.permute.xlu0 %403
    %406 = vrot.lane.b32.xlu0 %v380, 72
    %v407 = vpop.permute.xlu0 %406
    %409 = vrot.lane.b32.xlu0 %v380, 80
    %v410 = vpop.permute.xlu0 %409
    %412 = vrot.lane.b32.xlu0 %v380, 88
    %v413 = vpop.permute.xlu0 %412
    %415 = vrot.lane.b32.xlu0 %v380, 96
    %v416 = vpop.permute.xlu0 %415
    %418 = vrot.lane.b32.xlu0 %v380, 104
    %v419 = vpop.permute.xlu0 %418
    %421 = vrot.lane.b32.xlu0 %v380, 112
    %v422 = vpop.permute.xlu0 %421
    %424 = vrot.lane.b32.xlu0 %v380, 120
    %v425 = vpop.permute.xlu0 %424
    %v427 = vsel %vm67, %v380, %v383
    %v428 = vsel %vm69, %v427, %v386
    %v429 = vsel %vm51, %v428, %v389
    %v430 = vsel %vm35, %v429, %v392
    %v431 = vsel %vm37, %v430, %v395
    %v432 = vsel %vm39, %v431, %v398
    %v433 = vsel %vm41, %v432, %v401
    %v434 = vsel %vm43, %v433, %v404
    %v435 = vsel %vm114, %v434, %v407
    %v436 = vsel %vm243, %v435, %v410
    %vm437 = vcmask 719872
    %v438 = vsel %vm437, %v436, %v413
    %v439 = vsel %vm245, %v438, %v416
    %vm440 = vcmask 850944
    %v441 = vsel %vm440, %v439, %v419
    %v442 = vsel %vm247, %v441, %v422
    %vm443 = vcmask 982016
    %v444 = vsel %vm443, %v442, %v425
    %v445 = vadd.f32 %v27, %v444
    %446 = vst [vmem:[#allocation2] sm:$0x3] %v445
    // Predicated region
    $region30: #{tpu_custom_call.1} parent=1 // pred_check
      _
    $region31: #{tpu_custom_call.1} parent=1 // pred_check_branch
      %448 = sbr.rel (0) target = $region33
    $region32: #{tpu_custom_call.1} parent=1 // pred_region
      %s450 = ssub.s32 32, 32
      %451 = vsyncadd [#allocation3], %s450
      %s453 = sshll.u32 [#allocation2], 4
      %s454 = int_to_ptr.vmem [resolvable:$true] %s453
      %456 = dma.vmem_to_hbm [thread:$0]  %s454, 32, %s7, [#allocation3]
    $region33: #{tpu_custom_call.1} parent=1 // pred_fallthru
      _
    // Predicated region
    $region34: #{tpu_custom_call.1} parent=1 // pred_check
      _
    $region35: #{tpu_custom_call.1} parent=1 // pred_check_branch
      %458 = sbr.rel (0) target = $region37
    $region36: #{tpu_custom_call.1} parent=1 // pred_region
      %459 = dma.done [#allocation3], 32
    $region37: #{tpu_custom_call.1} parent=1 // pred_fallthru
      _
    %460 = vsyncpa [#allocation3], 1

</llo_original>
